<compile_context>
chip_gen: v7x
topology: tpu7x:2x2x1
jax: 0.10.0
libtpu: 0.0.40
codegen_flags: <defaults>
</compile_context>

<pallas_src>
import functools

import jax
import jax.numpy as jnp
from jax import lax
from jax.experimental import pallas as pl
from jax.experimental.pallas import tpu as pltpu

INPUT_SIZE = 15
HIDDEN = 16
NUM_LAYERS = 2


def _interleave_gate_blocks(l0, l1):
    """Interleave PyTorch-order gate blocks [i|f|g|o] (each H wide) of two cells
    into the fused 8H slot order [i0 i1 f0 f1 g0 g1 o0 o1]."""
    H = HIDDEN
    parts = []
    for g in range(4):
        parts.append(l0[..., g * H:(g + 1) * H])
        parts.append(l1[..., g * H:(g + 1) * H])
    return jnp.concatenate(parts, axis=-1)


def lstm_head_kernel(T, B,
                     x_ref, w0x_ref, wfused_ref, ball_ref, wlin_ref, blin_ref,
                     out_ref):
    """x_ref: (T*B, I) time-major rows (row r = t*B + b); out_ref: (B, 1).

    w0x_ref : (I, 8H)  layer-0 input weights scattered into layer-0 gate slots
                       (layer-1 slots are zero), f32.
    wfused_ref: (2H, 8H) bf16 block matrix [[w0h, w1_ih], [0, w1_hh]] in the
                       interleaved gate-slot layout.
    ball_ref: (1, 8H)  fused biases: (b_ih0+b_hh0) in layer-0 slots,
                       (b_ih1+b_hh1) in layer-1 slots.
    """
    H = HIDDEN
    G = 8 * H  # 128 lanes: both cells' gates side by side (lane-dense)

    # --- prologue (off the serial chain): input projection + biases, all steps
    proj = (jnp.dot(x_ref[...], w0x_ref[...],
                    preferred_element_type=jnp.float32)
            + ball_ref[...])                              # (T*B, 8H) f32
    proj = proj.reshape(T, B, G)                          # leading-dim time index

    # --- hoisted loop invariants --------------------------------------------
    wf = wfused_ref[...]                                  # (2H, 8H) bf16, resident
    lane = lax.broadcasted_iota(jnp.int32, (B, G), 1)
    g_mask = (lane >= 4 * H) & (lane < 6 * H)             # tanh lanes (g-gates, both cells)
    lane2 = lax.broadcasted_iota(jnp.int32, (B, 2 * H), 1)
    l0_mask = lane2 < H                                   # layer-0 half of packed state

    def packed_update(pre, c_packed):
        """pre: (B, 8H) pre-activation gates of both cells; c_packed: (B, 2H)."""
        act = jnp.where(g_mask, jnp.tanh(pre), jax.nn.sigmoid(pre))
        i_p = act[:, 0 * 2 * H:1 * 2 * H]                 # [i0 | i1]
        f_p = act[:, 1 * 2 * H:2 * 2 * H]                 # [f0 | f1]
        g_p = act[:, 2 * 2 * H:3 * 2 * H]                 # [g0 | g1]
        o_p = act[:, 3 * 2 * H:4 * 2 * H]                 # [o0 | o1]
        c_new = f_p * c_packed + i_p * g_p                # (B, 2H), f32
        return c_new, o_p

    # --- init step: h = c = 0, so only the addend contributes; keep only the
    # layer-0 half (layer 1 has not run yet), zero the layer-1 half of c.
    c_packed, o_p = packed_update(proj[0], jnp.zeros((B, 2 * H), jnp.float32))
    c_packed = jnp.where(l0_mask, c_packed, 0.0)
    h_packed = o_p * jnp.tanh(c_packed)                   # layer-1 half = o * tanh(0) = 0

    # --- fully unrolled recurrence: invariant entering step t is
    #   h_packed = [h1_t | h2_{t-1}],  c_packed = [c1_t | c2_{t-1}]
    # One fused matmul gives [gates0_{t+1} | gates1_t]; one packed update gives
    #   h_packed = [h1_{t+1} | h2_t].
    for t in range(T):
        addend = proj[(t + 1) % T]        # t == T-1: layer-0 half is a discarded dummy,
                                          # layer-1 half (= b1) is still correct.
        pre = (jnp.dot(h_packed.astype(jnp.bfloat16), wf,
                       preferred_element_type=jnp.float32) + addend)
        c_packed, o_p = packed_update(pre, c_packed)
        h_packed = o_p * jnp.tanh(c_packed)

    # --- head: ReLU on last layer-1 hidden state, Linear(16 -> 1) on the VPU
    h2 = h_packed[:, H:2 * H]                             # h2_{T-1}
    feat = jnp.maximum(h2, 0.0)
    out = jnp.sum(feat * wlin_ref[...], axis=-1, keepdims=True) + blin_ref[...]
    out_ref[...] = out.astype(out_ref.dtype)


def my_model_forward(x, params):
    """x: (B, T, I) batch-first float32 (as in the PyTorch module). Returns (B, 1)."""
    B, T, I = x.shape
    # Tiny host-side relayout: time-major 2-D view makes the hoisted input
    # projection one matmul and each timestep a clean leading-dim index.
    x_tm = jnp.transpose(x, (1, 0, 2)).reshape(T * B, I)

    args = (x_tm,
            params["w0x_pad"], params["w_fused"], params["b_all"],
            params["wlin"], params["blin"])

    vmem = pl.BlockSpec(memory_space=pltpu.MemorySpace.VMEM)
    kernel = functools.partial(lstm_head_kernel, T, B)
    return pl.pallas_call(
        kernel,
        out_shape=jax.ShapeDtypeStruct((B, 1), jnp.float32),
        in_specs=[vmem] * len(args),
        out_specs=vmem,
    )(*args)


def init_params(key):
    """Deterministic init matching PyTorch shapes: LSTM(15,16,num_layers=2), Linear(16,1).

    Returns (packed_kernel_params, raw_f32_params). Packing:
      w0x_pad : (I, 8H) f32  — w_ih_l0.T gate columns in layer-0 slots, zeros in layer-1 slots
      w_fused : (2H,8H) bf16 — [[w_hh_l0.T, w_ih_l1.T], [0, w_hh_l1.T]] interleaved gate slots
      b_all   : (1, 8H) f32  — (b_ih+b_hh) of each layer in its slots
      wlin    : (1, H) f32, blin : (1, 1) f32
    Gate order follows PyTorch: i, f, g, o.
    """
    H = HIDDEN
    I = INPUT_SIZE
    bound = 1.0 / (H ** 0.5)
    keys = jax.random.split(key, 10)

    def u(k, shape):
        return jax.random.uniform(k, shape, jnp.float32, -bound, bound)

    raw = {
        "w_ih0": u(keys[0], (4 * H, I)),
        "w_hh0": u(keys[1], (4 * H, H)),
        "b_ih0": u(keys[2], (4 * H,)),
        "b_hh0": u(keys[3], (4 * H,)),
        "w_ih1": u(keys[4], (4 * H, H)),
        "w_hh1": u(keys[5], (4 * H, H)),
        "b_ih1": u(keys[6], (4 * H,)),
        "b_hh1": u(keys[7], (4 * H,)),
        "w_lin": jax.random.uniform(keys[8], (1, H), jnp.float32, -bound, bound),
        "b_lin": jax.random.uniform(keys[9], (1,), jnp.float32, -bound, bound),
    }

    zeros_I = jnp.zeros((I, 4 * H), jnp.float32)
    zeros_H = jnp.zeros((H, 4 * H), jnp.float32)

    w0x_pad = _interleave_gate_blocks(raw["w_ih0"].T, zeros_I)           # (I, 8H)
    wf_top = _interleave_gate_blocks(raw["w_hh0"].T, raw["w_ih1"].T)     # (H, 8H)  h1 rows
    wf_bot = _interleave_gate_blocks(zeros_H, raw["w_hh1"].T)            # (H, 8H)  h2 rows
    w_fused = jnp.concatenate([wf_top, wf_bot], axis=0).astype(jnp.bfloat16)  # (2H, 8H)
    b_all = _interleave_gate_blocks((raw["b_ih0"] + raw["b_hh0"])[None, :],
                                    (raw["b_ih1"] + raw["b_hh1"])[None, :])   # (1, 8H)

    packed = {
        "w0x_pad": w0x_pad,
        "w_fused": w_fused,
        "b_all": b_all,
        "wlin": raw["w_lin"],                # (1, H) row for the VPU reduce
        "blin": raw["b_lin"][None, :],       # (1, 1)
    }
    return packed, raw


def reference_forward(x, raw):
    """Pure-JAX f32 reference of the same forward pass (sanity check)."""
    B, T, _ = x.shape
    H = HIDDEN

    def cell(gates, c):
        i = jax.nn.sigmoid(gates[:, 0 * H:1 * H])
        f = jax.nn.sigmoid(gates[:, 1 * H:2 * H])
        g = jnp.tanh(gates[:, 2 * H:3 * H])
        o = jax.nn.sigmoid(gates[:, 3 * H:4 * H])
        c_new = f * c + i * g
        return o * jnp.tanh(c_new), c_new

    h1 = c1 = h2 = c2 = jnp.zeros((B, H), jnp.float32)
    for t in range(T):
        g0 = (x[:, t, :] @ raw["w_ih0"].T + h1 @ raw["w_hh0"].T
              + raw["b_ih0"] + raw["b_hh0"])
        h1, c1 = cell(g0, c1)
        # dropout between layers is identity at inference
        g1 = (h1 @ raw["w_ih1"].T + h2 @ raw["w_hh1"].T
              + raw["b_ih1"] + raw["b_hh1"])
        h2, c2 = cell(g1, c2)
    feat = jnp.maximum(h2, 0.0)
    return feat @ raw["w_lin"].T + raw["b_lin"]


if __name__ == "__main__":
    key = jax.random.PRNGKey(0)
    k_param, k_x = jax.random.split(key)

    B, T = 2, 8
    x = jax.random.normal(k_x, (B, T, INPUT_SIZE), jnp.float32)
    params, raw = init_params(k_param)

    out = jax.block_until_ready(my_model_forward(x, params))
    ref = reference_forward(x, raw)

    assert out.shape == (B, 1)
    # bf16 MXU operands on the recurrent dots (f32 accumulation / state) ->
    # relaxed tolerance vs the pure-f32 reference, per the perf review.
    assert jnp.allclose(out, ref, atol=3e-2, rtol=3e-2), (out, ref)

    print("KERNEL_OK")
</pallas_src>

<mosaic_0001>
module attributes {stable_mosaic.version = 11 : i64} {
  func.func @lstm_head_kernel(%arg0: memref<16x15xf32, #tpu.memory_space<vmem>>, %arg1: memref<15x128xf32, #tpu.memory_space<vmem>>, %arg2: memref<32x128xbf16, #tpu.memory_space<vmem>>, %arg3: memref<1x128xf32, #tpu.memory_space<vmem>>, %arg4: memref<1x16xf32, #tpu.memory_space<vmem>>, %arg5: memref<1x1xf32, #tpu.memory_space<vmem>>, %arg6: memref<2x1xf32, #tpu.memory_space<vmem>>) attributes {dimension_semantics = [], scalar_prefetch = 0 : i64, scratch_operands = 0 : i64, tpu.core_type = #tpu.core_type<tc>} {
    %c0 = arith.constant 0 : index
    %c0_0 = arith.constant 0 : index
    %0 = vector.load %arg0[%c0, %c0_0] : memref<16x15xf32, #tpu.memory_space<vmem>>, vector<16x15xf32>
    %c0_1 = arith.constant 0 : index
    %c0_2 = arith.constant 0 : index
    %1 = vector.load %arg1[%c0_1, %c0_2] : memref<15x128xf32, #tpu.memory_space<vmem>>, vector<15x128xf32>
    %cst = arith.constant dense<0.000000e+00> : vector<16x128xf32>
    %2 = tpu.matmul %0, %1, %cst {dimension_numbers = #tpu.dot_dimension_numbers<[1], [0], [0], [1], [0, 0, 1, 1], [], []>} : vector<16x15xf32>, vector<15x128xf32>, vector<16x128xf32> -> vector<16x128xf32>
    %c0_3 = arith.constant 0 : index
    %c0_4 = arith.constant 0 : index
    %3 = vector.load %arg3[%c0_3, %c0_4] : memref<1x128xf32, #tpu.memory_space<vmem>>, vector<1x128xf32>
    %4 = vector.broadcast %3 : vector<1x128xf32> to vector<16x128xf32>
    %5 = arith.addf %2, %4 : vector<16x128xf32>
    %6 = vector.shape_cast %5 : vector<16x128xf32> to vector<8x2x128xf32>
    %c0_5 = arith.constant 0 : index
    %c0_6 = arith.constant 0 : index
    %7 = vector.load %arg2[%c0_5, %c0_6] : memref<32x128xbf16, #tpu.memory_space<vmem>>, vector<32x128xbf16>
    %8 = tpu.iota {dimensions = array<i32: 1>} : vector<2x128xi32>
    %c64_i32 = arith.constant 64 : i32
    %9 = vector.broadcast %c64_i32 : i32 to vector<2x128xi32>
    %10 = arith.cmpi sge, %8, %9 : vector<2x128xi32>
    %c96_i32 = arith.constant 96 : i32
    %11 = vector.broadcast %c96_i32 : i32 to vector<2x128xi32>
    %12 = arith.cmpi slt, %8, %11 : vector<2x128xi32>
    %13 = arith.andi %10, %12 : vector<2x128xi1>
    %14 = tpu.iota {dimensions = array<i32: 1>} : vector<2x32xi32>
    %c16_i32 = arith.constant 16 : i32
    %15 = vector.broadcast %c16_i32 : i32 to vector<2x32xi32>
    %16 = arith.cmpi slt, %14, %15 : vector<2x32xi32>
    %17 = vector.extract_strided_slice %6 {offsets = [0, 0, 0], sizes = [1, 2, 128], strides = [1, 1, 1]} : vector<8x2x128xf32> to vector<1x2x128xf32>
    %18 = vector.shape_cast %17 : vector<1x2x128xf32> to vector<2x128xf32>
    %cst_7 = arith.constant 0.000000e+00 : f32
    %19 = vector.broadcast %cst_7 : f32 to vector<2x32xf32>
    %20 = math.tanh %18 : vector<2x128xf32>
    %21 = arith.negf %18 : vector<2x128xf32>
    %22 = math.exp %21 : vector<2x128xf32>
    %cst_8 = arith.constant 1.000000e+00 : f32
    %23 = vector.broadcast %cst_8 : f32 to vector<2x128xf32>
    %24 = arith.addf %23, %22 : vector<2x128xf32>
    %25 = arith.divf %23, %24 : vector<2x128xf32>
    %26 = arith.select %13, %20, %25 : vector<2x128xi1>, vector<2x128xf32>
    %27 = vector.extract_strided_slice %26 {offsets = [0, 0], sizes = [2, 32], strides = [1, 1]} : vector<2x128xf32> to vector<2x32xf32>
    %28 = vector.extract_strided_slice %26 {offsets = [0, 32], sizes = [2, 32], strides = [1, 1]} : vector<2x128xf32> to vector<2x32xf32>
    %29 = vector.extract_strided_slice %26 {offsets = [0, 64], sizes = [2, 32], strides = [1, 1]} : vector<2x128xf32> to vector<2x32xf32>
    %30 = vector.extract_strided_slice %26 {offsets = [0, 96], sizes = [2, 32], strides = [1, 1]} : vector<2x128xf32> to vector<2x32xf32>
    %31 = arith.mulf %28, %19 : vector<2x32xf32>
    %32 = arith.mulf %27, %29 : vector<2x32xf32>
    %33 = arith.addf %31, %32 : vector<2x32xf32>
    %cst_9 = arith.constant 0.000000e+00 : f32
    %34 = vector.broadcast %cst_9 : f32 to vector<2x32xf32>
    %35 = arith.select %16, %33, %34 : vector<2x32xi1>, vector<2x32xf32>
    %36 = math.tanh %35 : vector<2x32xf32>
    %37 = arith.mulf %30, %36 : vector<2x32xf32>
    %38 = vector.extract_strided_slice %6 {offsets = [1, 0, 0], sizes = [1, 2, 128], strides = [1, 1, 1]} : vector<8x2x128xf32> to vector<1x2x128xf32>
    %39 = vector.shape_cast %38 : vector<1x2x128xf32> to vector<2x128xf32>
    %40 = arith.truncf %37 : vector<2x32xf32> to vector<2x32xbf16>
    %cst_10 = arith.constant dense<0.000000e+00> : vector<2x128xf32>
    %41 = tpu.matmul %40, %7, %cst_10 {dimension_numbers = #tpu.dot_dimension_numbers<[1], [0], [0], [1], [0, 0, 1, 1], [], []>} : vector<2x32xbf16>, vector<32x128xbf16>, vector<2x128xf32> -> vector<2x128xf32>
    %42 = arith.addf %41, %39 : vector<2x128xf32>
    %43 = math.tanh %42 : vector<2x128xf32>
    %44 = arith.negf %42 : vector<2x128xf32>
    %45 = math.exp %44 : vector<2x128xf32>
    %cst_11 = arith.constant 1.000000e+00 : f32
    %46 = vector.broadcast %cst_11 : f32 to vector<2x128xf32>
    %47 = arith.addf %46, %45 : vector<2x128xf32>
    %48 = arith.divf %46, %47 : vector<2x128xf32>
    %49 = arith.select %13, %43, %48 : vector<2x128xi1>, vector<2x128xf32>
    %50 = vector.extract_strided_slice %49 {offsets = [0, 0], sizes = [2, 32], strides = [1, 1]} : vector<2x128xf32> to vector<2x32xf32>
    %51 = vector.extract_strided_slice %49 {offsets = [0, 32], sizes = [2, 32], strides = [1, 1]} : vector<2x128xf32> to vector<2x32xf32>
    %52 = vector.extract_strided_slice %49 {offsets = [0, 64], sizes = [2, 32], strides = [1, 1]} : vector<2x128xf32> to vector<2x32xf32>
    %53 = vector.extract_strided_slice %49 {offsets = [0, 96], sizes = [2, 32], strides = [1, 1]} : vector<2x128xf32> to vector<2x32xf32>
    %54 = arith.mulf %51, %35 : vector<2x32xf32>
    %55 = arith.mulf %50, %52 : vector<2x32xf32>
    %56 = arith.addf %54, %55 : vector<2x32xf32>
    %57 = math.tanh %56 : vector<2x32xf32>
    %58 = arith.mulf %53, %57 : vector<2x32xf32>
    %59 = vector.extract_strided_slice %6 {offsets = [2, 0, 0], sizes = [1, 2, 128], strides = [1, 1, 1]} : vector<8x2x128xf32> to vector<1x2x128xf32>
    %60 = vector.shape_cast %59 : vector<1x2x128xf32> to vector<2x128xf32>
    %61 = arith.truncf %58 : vector<2x32xf32> to vector<2x32xbf16>
    %cst_12 = arith.constant dense<0.000000e+00> : vector<2x128xf32>
    %62 = tpu.matmul %61, %7, %cst_12 {dimension_numbers = #tpu.dot_dimension_numbers<[1], [0], [0], [1], [0, 0, 1, 1], [], []>} : vector<2x32xbf16>, vector<32x128xbf16>, vector<2x128xf32> -> vector<2x128xf32>
    %63 = arith.addf %62, %60 : vector<2x128xf32>
    %64 = math.tanh %63 : vector<2x128xf32>
    %65 = arith.negf %63 : vector<2x128xf32>
    %66 = math.exp %65 : vector<2x128xf32>
    %cst_13 = arith.constant 1.000000e+00 : f32
    %67 = vector.broadcast %cst_13 : f32 to vector<2x128xf32>
    %68 = arith.addf %67, %66 : vector<2x128xf32>
    %69 = arith.divf %67, %68 : vector<2x128xf32>
    %70 = arith.select %13, %64, %69 : vector<2x128xi1>, vector<2x128xf32>
    %71 = vector.extract_strided_slice %70 {offsets = [0, 0], sizes = [2, 32], strides = [1, 1]} : vector<2x128xf32> to vector<2x32xf32>
    %72 = vector.extract_strided_slice %70 {offsets = [0, 32], sizes = [2, 32], strides = [1, 1]} : vector<2x128xf32> to vector<2x32xf32>
    %73 = vector.extract_strided_slice %70 {offsets = [0, 64], sizes = [2, 32], strides = [1, 1]} : vector<2x128xf32> to vector<2x32xf32>
    %74 = vector.extract_strided_slice %70 {offsets = [0, 96], sizes = [2, 32], strides = [1, 1]} : vector<2x128xf32> to vector<2x32xf32>
    %75 = arith.mulf %72, %56 : vector<2x32xf32>
    %76 = arith.mulf %71, %73 : vector<2x32xf32>
    %77 = arith.addf %75, %76 : vector<2x32xf32>
    %78 = math.tanh %77 : vector<2x32xf32>
    %79 = arith.mulf %74, %78 : vector<2x32xf32>
    %80 = vector.extract_strided_slice %6 {offsets = [3, 0, 0], sizes = [1, 2, 128], strides = [1, 1, 1]} : vector<8x2x128xf32> to vector<1x2x128xf32>
    %81 = vector.shape_cast %80 : vector<1x2x128xf32> to vector<2x128xf32>
    %82 = arith.truncf %79 : vector<2x32xf32> to vector<2x32xbf16>
    %cst_14 = arith.constant dense<0.000000e+00> : vector<2x128xf32>
    %83 = tpu.matmul %82, %7, %cst_14 {dimension_numbers = #tpu.dot_dimension_numbers<[1], [0], [0], [1], [0, 0, 1, 1], [], []>} : vector<2x32xbf16>, vector<32x128xbf16>, vector<2x128xf32> -> vector<2x128xf32>
    %84 = arith.addf %83, %81 : vector<2x128xf32>
    %85 = math.tanh %84 : vector<2x128xf32>
    %86 = arith.negf %84 : vector<2x128xf32>
    %87 = math.exp %86 : vector<2x128xf32>
    %cst_15 = arith.constant 1.000000e+00 : f32
    %88 = vector.broadcast %cst_15 : f32 to vector<2x128xf32>
    %89 = arith.addf %88, %87 : vector<2x128xf32>
    %90 = arith.divf %88, %89 : vector<2x128xf32>
    %91 = arith.select %13, %85, %90 : vector<2x128xi1>, vector<2x128xf32>
    %92 = vector.extract_strided_slice %91 {offsets = [0, 0], sizes = [2, 32], strides = [1, 1]} : vector<2x128xf32> to vector<2x32xf32>
    %93 = vector.extract_strided_slice %91 {offsets = [0, 32], sizes = [2, 32], strides = [1, 1]} : vector<2x128xf32> to vector<2x32xf32>
    %94 = vector.extract_strided_slice %91 {offsets = [0, 64], sizes = [2, 32], strides = [1, 1]} : vector<2x128xf32> to vector<2x32xf32>
    %95 = vector.extract_strided_slice %91 {offsets = [0, 96], sizes = [2, 32], strides = [1, 1]} : vector<2x128xf32> to vector<2x32xf32>
    %96 = arith.mulf %93, %77 : vector<2x32xf32>
    %97 = arith.mulf %92, %94 : vector<2x32xf32>
    %98 = arith.addf %96, %97 : vector<2x32xf32>
    %99 = math.tanh %98 : vector<2x32xf32>
    %100 = arith.mulf %95, %99 : vector<2x32xf32>
    %101 = vector.extract_strided_slice %6 {offsets = [4, 0, 0], sizes = [1, 2, 128], strides = [1, 1, 1]} : vector<8x2x128xf32> to vector<1x2x128xf32>
    %102 = vector.shape_cast %101 : vector<1x2x128xf32> to vector<2x128xf32>
    %103 = arith.truncf %100 : vector<2x32xf32> to vector<2x32xbf16>
    %cst_16 = arith.constant dense<0.000000e+00> : vector<2x128xf32>
    %104 = tpu.matmul %103, %7, %cst_16 {dimension_numbers = #tpu.dot_dimension_numbers<[1], [0], [0], [1], [0, 0, 1, 1], [], []>} : vector<2x32xbf16>, vector<32x128xbf16>, vector<2x128xf32> -> vector<2x128xf32>
    %105 = arith.addf %104, %102 : vector<2x128xf32>
    %106 = math.tanh %105 : vector<2x128xf32>
    %107 = arith.negf %105 : vector<2x128xf32>
    %108 = math.exp %107 : vector<2x128xf32>
    %cst_17 = arith.constant 1.000000e+00 : f32
    %109 = vector.broadcast %cst_17 : f32 to vector<2x128xf32>
    %110 = arith.addf %109, %108 : vector<2x128xf32>
    %111 = arith.divf %109, %110 : vector<2x128xf32>
    %112 = arith.select %13, %106, %111 : vector<2x128xi1>, vector<2x128xf32>
    %113 = vector.extract_strided_slice %112 {offsets = [0, 0], sizes = [2, 32], strides = [1, 1]} : vector<2x128xf32> to vector<2x32xf32>
    %114 = vector.extract_strided_slice %112 {offsets = [0, 32], sizes = [2, 32], strides = [1, 1]} : vector<2x128xf32> to vector<2x32xf32>
    %115 = vector.extract_strided_slice %112 {offsets = [0, 64], sizes = [2, 32], strides = [1, 1]} : vector<2x128xf32> to vector<2x32xf32>
    %116 = vector.extract_strided_slice %112 {offsets = [0, 96], sizes = [2, 32], strides = [1, 1]} : vector<2x128xf32> to vector<2x32xf32>
    %117 = arith.mulf %114, %98 : vector<2x32xf32>
    %118 = arith.mulf %113, %115 : vector<2x32xf32>
    %119 = arith.addf %117, %118 : vector<2x32xf32>
    %120 = math.tanh %119 : vector<2x32xf32>
    %121 = arith.mulf %116, %120 : vector<2x32xf32>
    %122 = vector.extract_strided_slice %6 {offsets = [5, 0, 0], sizes = [1, 2, 128], strides = [1, 1, 1]} : vector<8x2x128xf32> to vector<1x2x128xf32>
    %123 = vector.shape_cast %122 : vector<1x2x128xf32> to vector<2x128xf32>
    %124 = arith.truncf %121 : vector<2x32xf32> to vector<2x32xbf16>
    %cst_18 = arith.constant dense<0.000000e+00> : vector<2x128xf32>
    %125 = tpu.matmul %124, %7, %cst_18 {dimension_numbers = #tpu.dot_dimension_numbers<[1], [0], [0], [1], [0, 0, 1, 1], [], []>} : vector<2x32xbf16>, vector<32x128xbf16>, vector<2x128xf32> -> vector<2x128xf32>
    %126 = arith.addf %125, %123 : vector<2x128xf32>
    %127 = math.tanh %126 : vector<2x128xf32>
    %128 = arith.negf %126 : vector<2x128xf32>
    %129 = math.exp %128 : vector<2x128xf32>
    %cst_19 = arith.constant 1.000000e+00 : f32
    %130 = vector.broadcast %cst_19 : f32 to vector<2x128xf32>
    %131 = arith.addf %130, %129 : vector<2x128xf32>
    %132 = arith.divf %130, %131 : vector<2x128xf32>
    %133 = arith.select %13, %127, %132 : vector<2x128xi1>, vector<2x128xf32>
    %134 = vector.extract_strided_slice %133 {offsets = [0, 0], sizes = [2, 32], strides = [1, 1]} : vector<2x128xf32> to vector<2x32xf32>
    %135 = vector.extract_strided_slice %133 {offsets = [0, 32], sizes = [2, 32], strides = [1, 1]} : vector<2x128xf32> to vector<2x32xf32>
    %136 = vector.extract_strided_slice %133 {offsets = [0, 64], sizes = [2, 32], strides = [1, 1]} : vector<2x128xf32> to vector<2x32xf32>
    %137 = vector.extract_strided_slice %133 {offsets = [0, 96], sizes = [2, 32], strides = [1, 1]} : vector<2x128xf32> to vector<2x32xf32>
    %138 = arith.mulf %135, %119 : vector<2x32xf32>
    %139 = arith.mulf %134, %136 : vector<2x32xf32>
    %140 = arith.addf %138, %139 : vector<2x32xf32>
    %141 = math.tanh %140 : vector<2x32xf32>
    %142 = arith.mulf %137, %141 : vector<2x32xf32>
    %143 = vector.extract_strided_slice %6 {offsets = [6, 0, 0], sizes = [1, 2, 128], strides = [1, 1, 1]} : vector<8x2x128xf32> to vector<1x2x128xf32>
    %144 = vector.shape_cast %143 : vector<1x2x128xf32> to vector<2x128xf32>
    %145 = arith.truncf %142 : vector<2x32xf32> to vector<2x32xbf16>
    %cst_20 = arith.constant dense<0.000000e+00> : vector<2x128xf32>
    %146 = tpu.matmul %145, %7, %cst_20 {dimension_numbers = #tpu.dot_dimension_numbers<[1], [0], [0], [1], [0, 0, 1, 1], [], []>} : vector<2x32xbf16>, vector<32x128xbf16>, vector<2x128xf32> -> vector<2x128xf32>
    %147 = arith.addf %146, %144 : vector<2x128xf32>
    %148 = math.tanh %147 : vector<2x128xf32>
    %149 = arith.negf %147 : vector<2x128xf32>
    %150 = math.exp %149 : vector<2x128xf32>
    %cst_21 = arith.constant 1.000000e+00 : f32
    %151 = vector.broadcast %cst_21 : f32 to vector<2x128xf32>
    %152 = arith.addf %151, %150 : vector<2x128xf32>
    %153 = arith.divf %151, %152 : vector<2x128xf32>
    %154 = arith.select %13, %148, %153 : vector<2x128xi1>, vector<2x128xf32>
    %155 = vector.extract_strided_slice %154 {offsets = [0, 0], sizes = [2, 32], strides = [1, 1]} : vector<2x128xf32> to vector<2x32xf32>
    %156 = vector.extract_strided_slice %154 {offsets = [0, 32], sizes = [2, 32], strides = [1, 1]} : vector<2x128xf32> to vector<2x32xf32>
    %157 = vector.extract_strided_slice %154 {offsets = [0, 64], sizes = [2, 32], strides = [1, 1]} : vector<2x128xf32> to vector<2x32xf32>
    %158 = vector.extract_strided_slice %154 {offsets = [0, 96], sizes = [2, 32], strides = [1, 1]} : vector<2x128xf32> to vector<2x32xf32>
    %159 = arith.mulf %156, %140 : vector<2x32xf32>
    %160 = arith.mulf %155, %157 : vector<2x32xf32>
    %161 = arith.addf %159, %160 : vector<2x32xf32>
    %162 = math.tanh %161 : vector<2x32xf32>
    %163 = arith.mulf %158, %162 : vector<2x32xf32>
    %164 = vector.extract_strided_slice %6 {offsets = [7, 0, 0], sizes = [1, 2, 128], strides = [1, 1, 1]} : vector<8x2x128xf32> to vector<1x2x128xf32>
    %165 = vector.shape_cast %164 : vector<1x2x128xf32> to vector<2x128xf32>
    %166 = arith.truncf %163 : vector<2x32xf32> to vector<2x32xbf16>
    %cst_22 = arith.constant dense<0.000000e+00> : vector<2x128xf32>
    %167 = tpu.matmul %166, %7, %cst_22 {dimension_numbers = #tpu.dot_dimension_numbers<[1], [0], [0], [1], [0, 0, 1, 1], [], []>} : vector<2x32xbf16>, vector<32x128xbf16>, vector<2x128xf32> -> vector<2x128xf32>
    %168 = arith.addf %167, %165 : vector<2x128xf32>
    %169 = math.tanh %168 : vector<2x128xf32>
    %170 = arith.negf %168 : vector<2x128xf32>
    %171 = math.exp %170 : vector<2x128xf32>
    %cst_23 = arith.constant 1.000000e+00 : f32
    %172 = vector.broadcast %cst_23 : f32 to vector<2x128xf32>
    %173 = arith.addf %172, %171 : vector<2x128xf32>
    %174 = arith.divf %172, %173 : vector<2x128xf32>
    %175 = arith.select %13, %169, %174 : vector<2x128xi1>, vector<2x128xf32>
    %176 = vector.extract_strided_slice %175 {offsets = [0, 0], sizes = [2, 32], strides = [1, 1]} : vector<2x128xf32> to vector<2x32xf32>
    %177 = vector.extract_strided_slice %175 {offsets = [0, 32], sizes = [2, 32], strides = [1, 1]} : vector<2x128xf32> to vector<2x32xf32>
    %178 = vector.extract_strided_slice %175 {offsets = [0, 64], sizes = [2, 32], strides = [1, 1]} : vector<2x128xf32> to vector<2x32xf32>
    %179 = vector.extract_strided_slice %175 {offsets = [0, 96], sizes = [2, 32], strides = [1, 1]} : vector<2x128xf32> to vector<2x32xf32>
    %180 = arith.mulf %177, %161 : vector<2x32xf32>
    %181 = arith.mulf %176, %178 : vector<2x32xf32>
    %182 = arith.addf %180, %181 : vector<2x32xf32>
    %183 = math.tanh %182 : vector<2x32xf32>
    %184 = arith.mulf %179, %183 : vector<2x32xf32>
    %185 = vector.extract_strided_slice %6 {offsets = [0, 0, 0], sizes = [1, 2, 128], strides = [1, 1, 1]} : vector<8x2x128xf32> to vector<1x2x128xf32>
    %186 = vector.shape_cast %185 : vector<1x2x128xf32> to vector<2x128xf32>
    %187 = arith.truncf %184 : vector<2x32xf32> to vector<2x32xbf16>
    %cst_24 = arith.constant dense<0.000000e+00> : vector<2x128xf32>
    %188 = tpu.matmul %187, %7, %cst_24 {dimension_numbers = #tpu.dot_dimension_numbers<[1], [0], [0], [1], [0, 0, 1, 1], [], []>} : vector<2x32xbf16>, vector<32x128xbf16>, vector<2x128xf32> -> vector<2x128xf32>
    %189 = arith.addf %188, %186 : vector<2x128xf32>
    %190 = math.tanh %189 : vector<2x128xf32>
    %191 = arith.negf %189 : vector<2x128xf32>
    %192 = math.exp %191 : vector<2x128xf32>
    %cst_25 = arith.constant 1.000000e+00 : f32
    %193 = vector.broadcast %cst_25 : f32 to vector<2x128xf32>
    %194 = arith.addf %193, %192 : vector<2x128xf32>
    %195 = arith.divf %193, %194 : vector<2x128xf32>
    %196 = arith.select %13, %190, %195 : vector<2x128xi1>, vector<2x128xf32>
    %197 = vector.extract_strided_slice %196 {offsets = [0, 0], sizes = [2, 32], strides = [1, 1]} : vector<2x128xf32> to vector<2x32xf32>
    %198 = vector.extract_strided_slice %196 {offsets = [0, 32], sizes = [2, 32], strides = [1, 1]} : vector<2x128xf32> to vector<2x32xf32>
    %199 = vector.extract_strided_slice %196 {offsets = [0, 64], sizes = [2, 32], strides = [1, 1]} : vector<2x128xf32> to vector<2x32xf32>
    %200 = vector.extract_strided_slice %196 {offsets = [0, 96], sizes = [2, 32], strides = [1, 1]} : vector<2x128xf32> to vector<2x32xf32>
    %201 = arith.mulf %198, %182 : vector<2x32xf32>
    %202 = arith.mulf %197, %199 : vector<2x32xf32>
    %203 = arith.addf %201, %202 : vector<2x32xf32>
    %204 = math.tanh %203 : vector<2x32xf32>
    %205 = arith.mulf %200, %204 : vector<2x32xf32>
    %206 = vector.extract_strided_slice %205 {offsets = [0, 16], sizes = [2, 16], strides = [1, 1]} : vector<2x32xf32> to vector<2x16xf32>
    %cst_26 = arith.constant 0.000000e+00 : f32
    %207 = vector.broadcast %cst_26 : f32 to vector<2x16xf32>
    %208 = arith.maximumf %206, %207 : vector<2x16xf32>
    %c0_27 = arith.constant 0 : index
    %c0_28 = arith.constant 0 : index
    %209 = vector.load %arg4[%c0_27, %c0_28] : memref<1x16xf32, #tpu.memory_space<vmem>>, vector<1x16xf32>
    %210 = vector.broadcast %209 : vector<1x16xf32> to vector<2x16xf32>
    %211 = arith.mulf %208, %210 : vector<2x16xf32>
    %cst_29 = arith.constant dense<0.000000e+00> : vector<2xf32>
    %212 = vector.multi_reduction <add>, %211, %cst_29 [1] : vector<2x16xf32> to vector<2xf32>
    %213 = vector.shape_cast %212 : vector<2xf32> to vector<2x1xf32>
    %c0_30 = arith.constant 0 : index
    %c0_31 = arith.constant 0 : index
    %214 = vector.load %arg5[%c0_30, %c0_31] : memref<1x1xf32, #tpu.memory_space<vmem>>, vector<1x1xf32>
    %215 = vector.broadcast %214 : vector<1x1xf32> to vector<2x1xf32>
    %216 = arith.addf %213, %215 : vector<2x1xf32>
    %c0_32 = arith.constant 0 : index
    %c0_33 = arith.constant 0 : index
    %217 = vector.load %arg6[%c0_32, %c0_33] : memref<2x1xf32, #tpu.memory_space<vmem>>, vector<2x1xf32>
    tpu.vector_store %arg6[%c0_32, %c0_33], %216 {strides = array<i32>} : memref<2x1xf32, #tpu.memory_space<vmem>>, vector<2x1xf32>,
    return
  }
}

</mosaic_0001>

<llo_original>
// kernel: tpu_custom_call.1
$region0: #{tpu_custom_call.1}
  #allocation0 [shape = 'u32[]', space=smem, size = 0x4, offset = 0x4, fixed_abs, tag = 'smem constant byte address 0x4 - core index']
  #allocation1 [shape = 'u32[144,128]{1,0:T(1,128)}', space=vmem, size = 0x12000, scoped, tag = 'internal scratch']
  #allocation2 [shape = 'f32[1,1]{1,0:T(1,128)S(1)}', space=vmem, size = 0x200, scoped, tag = 'scoped memory for tpu_custom_call.1']
  %s0 = inlined_call_operand.hbm [shape: f32[16,15], index: 0, kind: input, shape index: {}]
  %s1 = inlined_call_operand.hbm [shape: f32[15,128], index: 1, kind: input, shape index: {}]
  %s2 = inlined_call_operand.hbm [shape: bf16[32,128], index: 2, kind: input, shape index: {}]
  %s3 = inlined_call_operand.vmem [shape: f32[1,128], index: 3, kind: input, shape index: {}]
  %s4 = inlined_call_operand.vmem [shape: f32[1,16], index: 4, kind: input, shape index: {}]
  %s5 = inlined_call_operand.<no memory space> [shape: f32[1,1], index: 5, kind: input, shape index: {}]
  %s6 = inlined_call_operand.vmem [shape: f32[2,1], index: 6, kind: output, shape index: {}]
  %s7 = sld [smem:[#allocation0]]
  $region46: #{tpu_custom_call.1} parent=0
    _
  %s9 = ssub.s32 1, %s7
  %s10 = scalar_select 0, %s9, %s7
  %v11 = vstv %s5
  %12 = vst [vmem:[#allocation2] sm:$0x1] %v11
  $region1: #{tpu_custom_call.1} parent=0
    #allocation3 [shape = 'u8[8192]{0}', space=vmem, size = 0x2000, scoped, tag = 'input window, operand 0, single buffered']
    #allocation4 [shape = 's32[1]{0}', space=sflag, size = 0x4, scoped, tag = 'scoped memory for tpu_custom_call.1']
    #allocation5 [shape = 'u8[8192]{0}', space=vmem, size = 0x2000, scoped, tag = 'input window, operand 1, single buffered']
    #allocation6 [shape = 's32[1]{0}', space=sflag, size = 0x4, scoped, tag = 'scoped memory for tpu_custom_call.1']
    #allocation7 [shape = 'u8[8192]{0}', space=vmem, size = 0x2000, scoped, tag = 'input window, operand 2, single buffered']
    %13 = vsyncpa [#allocation4], 0
    %14 = vsyncpa [#allocation6], 0
    // Predicated region
    $region2: #{tpu_custom_call.1} parent=1 // pred_check
      _
    $region3: #{tpu_custom_call.1} parent=1 // pred_check_branch
      %16 = sbr.rel (0) target = $region5
    $region4: #{tpu_custom_call.1} parent=1 // pred_region
      %s18 = ssub.s32 256, 256
      %19 = vsyncadd [#allocation4], %s18
      %s20 = sshll.u32 [#allocation3], 4
      %s21 = int_to_ptr.vmem [resolvable:$true] %s20
      %26 = dma.hbm_to_vmem [thread:$0]  %s0, 256, %s21, [#allocation4], 128, 128, 8
    $region5: #{tpu_custom_call.1} parent=1 // pred_fallthru
      _
    // Predicated region
    $region6: #{tpu_custom_call.1} parent=1 // pred_check
      _
    $region7: #{tpu_custom_call.1} parent=1 // pred_check_branch
      %28 = sbr.rel (0) target = $region9
    $region8: #{tpu_custom_call.1} parent=1 // pred_region
      %s30 = ssub.s32 256, 256
      %31 = vsyncadd [#allocation6], %s30
      %s32 = sshll.u32 [#allocation5], 4
      %s33 = int_to_ptr.vmem [resolvable:$true] %s32
      %38 = dma.hbm_to_vmem [thread:$0]  %s1, 256, %s33, [#allocation6], 128, 128, 8
    $region9: #{tpu_custom_call.1} parent=1 // pred_fallthru
      _
    // Predicated region
    $region10: #{tpu_custom_call.1} parent=1 // pred_check
      _
    $region11: #{tpu_custom_call.1} parent=1 // pred_check_branch
      %40 = sbr.rel (0) target = $region13
    $region12: #{tpu_custom_call.1} parent=1 // pred_region
      %s42 = ssub.s32 256, 256
      %43 = vsyncadd [#allocation6], %s42
      %s44 = sshll.u32 [#allocation7], 4
      %s45 = int_to_ptr.vmem [resolvable:$true] %s44
      %50 = dma.hbm_to_vmem [thread:$0]  %s2, 256, %s45, [#allocation6], 64, 64, 4
    $region13: #{tpu_custom_call.1} parent=1 // pred_fallthru
      _
    // Predicated region
    $region14: #{tpu_custom_call.1} parent=1 // pred_check
      _
    $region15: #{tpu_custom_call.1} parent=1 // pred_check_branch
      %52 = sbr.rel (0) target = $region17
    $region16: #{tpu_custom_call.1} parent=1 // pred_region
      _
    $region17: #{tpu_custom_call.1} parent=1 // pred_fallthru
      _
    // Predicated region
    $region18: #{tpu_custom_call.1} parent=1 // pred_check
      _
    $region19: #{tpu_custom_call.1} parent=1 // pred_check_branch
      %54 = sbr.rel (0) target = $region21
    $region20: #{tpu_custom_call.1} parent=1 // pred_region
      _
    $region21: #{tpu_custom_call.1} parent=1 // pred_fallthru
      _
    // Predicated region
    $region22: #{tpu_custom_call.1} parent=1 // pred_check
      _
    $region23: #{tpu_custom_call.1} parent=1 // pred_check_branch
      %56 = sbr.rel (0) target = $region25
    $region24: #{tpu_custom_call.1} parent=1 // pred_region
      _
    $region25: #{tpu_custom_call.1} parent=1 // pred_fallthru
      _
    // Predicated region
    $region26: #{tpu_custom_call.1} parent=1 // pred_check
      _
    $region27: #{tpu_custom_call.1} parent=1 // pred_check_branch
      %58 = sbr.rel (0) target = $region29
    $region28: #{tpu_custom_call.1} parent=1 // pred_region
      %59 = dma.done [#allocation4], 256
    $region29: #{tpu_custom_call.1} parent=1 // pred_fallthru
      _
    // Predicated region
    $region30: #{tpu_custom_call.1} parent=1 // pred_check
      _
    $region31: #{tpu_custom_call.1} parent=1 // pred_check_branch
      %61 = sbr.rel (0) target = $region33
    $region32: #{tpu_custom_call.1} parent=1 // pred_region
      %62 = dma.done [#allocation6], 256
    $region33: #{tpu_custom_call.1} parent=1 // pred_fallthru
      _
    // Predicated region
    $region34: #{tpu_custom_call.1} parent=1 // pred_check
      _
    $region35: #{tpu_custom_call.1} parent=1 // pred_check_branch
      %64 = sbr.rel (0) target = $region37
    $region36: #{tpu_custom_call.1} parent=1 // pred_region
      %65 = dma.done [#allocation6], 256
    $region37: #{tpu_custom_call.1} parent=1 // pred_fallthru
      _
    %v67 = vld [vmem:[#allocation3] sm:$0xff]
    %v68 = vld [vmem:[#allocation3 + $0x8] sm:$0xff]
    %v69 = vld [vmem:[#allocation5] sm:$0xff]
    %v70 = vld [vmem:[#allocation5 + $0x8] sm:$0x7f]
    %v71 = vld [vmem:[%s3] sm:$0x1]
    %v73 = vlaneseq
    %v74 = vshrl.u32 %v73, 7
    %v75 = vsub.s32 0, %v74
    %v76 = vrot.slane %v71, %v75
    %vm78 = vcmask 121856
    %v80 = vsel %vm78, %v67, 0
    %v83 = vsel %vm78, %v68, 0
    %vm85 = vcmask 1046528
    %v87 = vsel %vm85, %v70, 0
    %89 = vmatprep.subr.mxu0 0.0
    %90 = vmatpush1.msra.mxu0 %v69
    %91 = vmatprep.subr.mxu0 0.0
    %92 = vmatpush1.msra.mxu0 %v87
    %93 = vmatprep.subr.mxu0 0.0
    %94 = vmatpush1.msra.mxu0 0.0
    %95 = vmatprep.subr.mxu0 0.0
    %96 = vmatpush1.msra.mxu0 0.0
    %97 = vmatprep.subr.mxu0 0.0
    %98 = vmatpush1.msra.mxu0 0.0
    %99 = vmatprep.subr.mxu0 0.0
    %100 = vmatpush1.msra.mxu0 0.0
    %101 = vmatprep.subr.mxu0 0.0
    %102 = vmatpush1.msra.mxu0 0.0
    %103 = vmatprep.subr.mxu0 0.0
    %104 = vmatpush1.msra.mxu0 0.0
    %105 = vmatprep.subr.mxu0 0.0
    %106 = vmatpush1.msra.mxu0 0.0
    %107 = vmatprep.subr.mxu0 0.0
    %108 = vmatpush1.msra.mxu0 0.0
    %109 = vmatprep.subr.mxu0 0.0
    %110 = vmatpush1.msra.mxu0 0.0
    %111 = vmatprep.subr.mxu0 0.0
    %112 = vmatpush1.msra.mxu0 0.0
    %113 = vmatprep.subr.mxu0 0.0
    %114 = vmatpush1.msra.mxu0 0.0
    %115 = vmatprep.subr.mxu0 0.0
    %116 = vmatpush1.msra.mxu0 0.0
    %117 = vmatprep.subr.mxu0 0.0
    %118 = vmatpush1.msra.mxu0 0.0
    %119 = vmatprep.subr.mxu0 0.0
    %120 = vmatpush1.msra.mxu0 0.0
    %121 = vmatprep.subr.mxu0 0.0
    %122 = vmatpush1.msra.mxu0 0.0
    %123 = vmatprep.subr.mxu0 0.0
    %124 = vmatpush1.msra.mxu0 0.0
    %125 = vmatprep.subr.mxu0 0.0
    %126 = vmatpush1.msra.mxu0 0.0
    %127 = vmatprep.subr.mxu0 0.0
    %128 = vmatpush1.msra.mxu0 0.0
    %129 = vmatprep.subr.mxu0 0.0
    %130 = vmatpush1.msra.mxu0 0.0
    %131 = vmatprep.subr.mxu0 0.0
    %132 = vmatpush1.msra.mxu0 0.0
    %133 = vmatprep.subr.mxu0 0.0
    %134 = vmatpush1.msra.mxu0 0.0
    %135 = vmatprep.subr.mxu0 0.0
    %136 = vmatpush1.msra.mxu0 0.0
    %137 = vmatprep.subr.mxu0 0.0
    %138 = vmatpush1.msra.mxu0 0.0
    %139 = vmatprep.subr.mxu0 0.0
    %140 = vmatpush1.msra.mxu0 0.0
    %141 = vmatprep.subr.mxu0 0.0
    %142 = vmatpush1.msra.mxu0 0.0
    %143 = vmatprep.subr.mxu0 0.0
    %144 = vmatpush1.msra.mxu0 0.0
    %145 = vmatprep.subr.mxu0 0.0
    %146 = vmatpush1.msra.mxu0 0.0
    %147 = vmatprep.subr.mxu0 0.0
    %148 = vmatpush1.msra.mxu0 0.0
    %149 = vmatprep.subr.mxu0 0.0
    %150 = vmatpush1.msra.mxu0 0.0
    %151 = vmatprep.subr.mxu0 0.0
    %152 = vmatpush1.msra.mxu0 0.0
    %153 = vmatprep.mubr.f32.mxu0 0.0
    %154 = vmatmul.mubr.f32.gmra.mrb[0].mxu0 %v80
    %v155 = vpop.f32.mrb[0].mxu0
    %v156 = vadd.f32 %v76, %v155
    %v157 = vpop.f32.mrb[0].mxu0
    %158 = vmatprep.mubr.f32.mxu0 0.0
    %159 = vmatmul.mubr.f32.gmra.mrb[0].mxu0 %v83
    %v160 = vpop.f32.mrb[0].mxu0
    %v161 = vadd.f32 %v76, %v160
    %v162 = vpop.f32.mrb[0].mxu0
    %163 = vdwg.mxu0
    %v166 = vcombine.high %v156, %v156
    %v168 = vunpack.c.l.s4 1983009808
    %v169 = vunpack.c.0.s8 %v168
    %v170 = vlaneseq
    %v171 = vshrl.u32 %v170, 7
    %v172 = vsub.s32 %v169, %v171
    %v173 = vrot.slane %v156, %v172
    %v175 = vunpack.c.l.s4 1983009808
    %v176 = vunpack.c.0.s8 %v175
    %v177 = vlaneseq
    %v178 = vshrl.u32 %v177, 7
    %v179 = vsub.s32 %v176, %v178
    %v180 = vrot.slane %v166, %v179
    %v181 = vcombine.high %v173, %v173
    %v182 = vcombine.high %v180, %v180
    %v183 = vcombine.high %v161, %v161
    %v185 = vunpack.c.l.s4 1983009808
    %v186 = vunpack.c.0.s8 %v185
    %v187 = vlaneseq
    %v188 = vshrl.u32 %v187, 7
    %v189 = vsub.s32 %v186, %v188
    %v190 = vrot.slane %v161, %v189
    %v192 = vunpack.c.l.s4 1983009808
    %v193 = vunpack.c.0.s8 %v192
    %v194 = vlaneseq
    %v195 = vshrl.u32 %v194, 7
    %v196 = vsub.s32 %v193, %v195
    %v197 = vrot.slane %v183, %v196
    %v198 = vcombine.high %v190, %v190
    %v199 = vcombine.high %v197, %v197
    %v208 = vld [vmem:[#allocation7] sm:$0xf]
    %v209 = vld [vmem:[#allocation7 + $0x4] sm:$0xf]
    %v210 = vld [vmem:[#allocation7 + $0x8] sm:$0xf]
    %v211 = vld [vmem:[#allocation7 + $0xc] sm:$0xf]
    %v212 = vlaneseq
    %v213 = vand.u32 %v212, 127
    %vm214 = vcmp.ge.s32.totalorder %v213, 64
    %vm215 = vcmp.lt.s32.totalorder %v213, 96
    %vm216 = vmand %vm214, %vm215
    %vm217 = vcmp.lt.s32.totalorder %v213, 16
    %v218 = vtanh.pop %v173
    %v219 = vxor.u32 %v173, 2147483648
    %v220 = vmul.f32 %v219, 1.442695
    %v221 = vpow.pop %v220
    %v222 = vadd.f32 %v221, 1.0
    %v223 = vrcp.pop %v222
    %v224 = vmul.f32 1.0, %v223
    %v225 = vsel %vm216, %v218, %v224
    %v226 = vmul.f32 %v225, 0.0
    %228 = vrot.lane.b32.xlu0 %v225, 64
    %v229 = vpop.permute.xlu0 %228
    %v231 = vmul.f32 %v225, %v229
    %233 = vrot.lane.b32.xlu0 %v231, 32
    %v234 = vpop.permute.xlu0 %233
    %v236 = vadd.f32 %v226, %v234
    %238 = vrot.lane.b32.xlu0 %v236, 96
    %v239 = vpop.permute.xlu0 %238
    %v241 = vsel %vm217, %v239, 0.0
    %v242 = vtanh.pop %v241
    %244 = vrot.lane.b32.xlu0 %v242, 96
    %v245 = vpop.permute.xlu0 %244
    %v247 = vmul.f32 %v225, %v245
    %v248 = vpack.c.bf16 %v247, %v247
    %250 = vrot.lane.b32.xlu0 %v248, 32
    %v251 = vpop.permute.xlu0 %250
    %v256 = vunpack.c.l.b16 %v208
    %v257 = vunpack.c.l.b16 %v209
    %v258 = vunpack.c.l.b16 %v210
    %v259 = vunpack.c.l.b16 %v211
    %v260 = vpack.c.b16 %v257, %v256
    %v261 = vpack.c.b16 %v259, %v258
    %vm264 = vcmask 261120
    %v266 = vsel %vm264, %v251, 0
    %268 = vmatprep.subr.bf16.mxu0 0
    %269 = vmatpush1.bf16.msra.mxu0 %v260
    %270 = vmatprep.subr.bf16.mxu0 0
    %271 = vmatpush1.bf16.msra.mxu0 %v261
    %272 = vmatprep.subr.bf16.mxu0 0
    %273 = vmatpush1.bf16.msra.mxu0 0
    %274 = vmatprep.subr.bf16.mxu0 0
    %275 = vmatpush1.bf16.msra.mxu0 0
    %276 = vmatprep.subr.bf16.mxu0 0
    %277 = vmatpush1.bf16.msra.mxu0 0
    %278 = vmatprep.subr.bf16.mxu0 0
    %279 = vmatpush1.bf16.msra.mxu0 0
    %280 = vmatprep.subr.bf16.mxu0 0
    %281 = vmatpush1.bf16.msra.mxu0 0
    %282 = vmatprep.subr.bf16.mxu0 0
    %283 = vmatpush1.bf16.msra.mxu0 0
    %284 = vmatprep.subr.bf16.mxu0 0
    %285 = vmatpush1.bf16.msra.mxu0 0
    %286 = vmatprep.subr.bf16.mxu0 0
    %287 = vmatpush1.bf16.msra.mxu0 0
    %288 = vmatprep.subr.bf16.mxu0 0
    %289 = vmatpush1.bf16.msra.mxu0 0
    %290 = vmatprep.subr.bf16.mxu0 0
    %291 = vmatpush1.bf16.msra.mxu0 0
    %292 = vmatprep.subr.bf16.mxu0 0
    %293 = vmatpush1.bf16.msra.mxu0 0
    %294 = vmatprep.subr.bf16.mxu0 0
    %295 = vmatpush1.bf16.msra.mxu0 0
    %296 = vmatprep.subr.bf16.mxu0 0
    %297 = vmatpush1.bf16.msra.mxu0 0
    %298 = vmatprep.subr.bf16.mxu0 0
    %299 = vmatpush1.bf16.msra.mxu0 0
    %300 = vmatprep.mubr.bf16.mxu0 0
    %301 = vmatmul.mubr.bf16.gmra.mrb[0].mxu0 %v266
    %v302 = vpop.f32.mrb[0].mxu0
    %v303 = vadd.f32 %v181, %v302
    %v304 = vpop.f32.mrb[0].mxu0
    %v305 = vpop.f32.mrb[0].mxu0
    %v306 = vpop.f32.mrb[0].mxu0
    %307 = vdwg.mxu0
    %v308 = vtanh.pop %v303
    %v309 = vxor.u32 %v303, 2147483648
    %v310 = vmul.f32 %v309, 1.442695
    %v311 = vpow.pop %v310
    %v312 = vadd.f32 %v311, 1.0
    %v313 = vrcp.pop %v312
    %v314 = vmul.f32 1.0, %v313
    %v315 = vsel %vm216, %v308, %v314
    %317 = vrot.lane.b32.xlu0 %v241, 32
    %v318 = vpop.permute.xlu0 %317
    %v320 = vmul.f32 %v315, %v318
    %322 = vrot.lane.b32.xlu0 %v315, 64
    %v323 = vpop.permute.xlu0 %322
    %v325 = vmul.f32 %v315, %v323
    %327 = vrot.lane.b32.xlu0 %v325, 32
    %v328 = vpop.permute.xlu0 %327
    %v330 = vadd.f32 %v320, %v328
    %v331 = vtanh.pop %v330
    %333 = vrot.lane.b32.xlu0 %v331, 64
    %v334 = vpop.permute.xlu0 %333
    %v336 = vmul.f32 %v315, %v334
    %v337 = vpack.c.bf16 %v336, %v336
    %339 = vrot.lane.b32.xlu0 %v337, 32
    %v340 = vpop.permute.xlu0 %339
    %v342 = vsel %vm264, %v340, 0
    %344 = vmatprep.subr.bf16.mxu0 0
    %345 = vmatpush1.bf16.msra.mxu0 %v260
    %346 = vmatprep.subr.bf16.mxu0 0
    %347 = vmatpush1.bf16.msra.mxu0 %v261
    %348 = vmatprep.subr.bf16.mxu0 0
    %349 = vmatpush1.bf16.msra.mxu0 0
    %350 = vmatprep.subr.bf16.mxu0 0
    %351 = vmatpush1.bf16.msra.mxu0 0
    %352 = vmatprep.subr.bf16.mxu0 0
    %353 = vmatpush1.bf16.msra.mxu0 0
    %354 = vmatprep.subr.bf16.mxu0 0
    %355 = vmatpush1.bf16.msra.mxu0 0
    %356 = vmatprep.subr.bf16.mxu0 0
    %357 = vmatpush1.bf16.msra.mxu0 0
    %358 = vmatprep.subr.bf16.mxu0 0
    %359 = vmatpush1.bf16.msra.mxu0 0
    %360 = vmatprep.subr.bf16.mxu0 0
    %361 = vmatpush1.bf16.msra.mxu0 0
    %362 = vmatprep.subr.bf16.mxu0 0
    %363 = vmatpush1.bf16.msra.mxu0 0
    %364 = vmatprep.subr.bf16.mxu0 0
    %365 = vmatpush1.bf16.msra.mxu0 0
    %366 = vmatprep.subr.bf16.mxu0 0
    %367 = vmatpush1.bf16.msra.mxu0 0
    %368 = vmatprep.subr.bf16.mxu0 0
    %369 = vmatpush1.bf16.msra.mxu0 0
    %370 = vmatprep.subr.bf16.mxu0 0
    %371 = vmatpush1.bf16.msra.mxu0 0
    %372 = vmatprep.subr.bf16.mxu0 0
    %373 = vmatpush1.bf16.msra.mxu0 0
    %374 = vmatprep.subr.bf16.mxu0 0
    %375 = vmatpush1.bf16.msra.mxu0 0
    %376 = vmatprep.mubr.bf16.mxu0 0
    %377 = vmatmul.mubr.bf16.gmra.mrb[0].mxu0 %v342
    %v378 = vpop.f32.mrb[0].mxu0
    %v379 = vadd.f32 %v180, %v378
    %v380 = vpop.f32.mrb[0].mxu0
    %v381 = vpop.f32.mrb[0].mxu0
    %v382 = vpop.f32.mrb[0].mxu0
    %383 = vdwg.mxu0
    %v384 = vtanh.pop %v379
    %v385 = vxor.u32 %v379, 2147483648
    %v386 = vmul.f32 %v385, 1.442695
    %v387 = vpow.pop %v386
    %v388 = vadd.f32 %v387, 1.0
    %v389 = vrcp.pop %v388
    %v390 = vmul.f32 1.0, %v389
    %v391 = vsel %vm216, %v384, %v390
    %v392 = vmul.f32 %v391, %v330
    %394 = vrot.lane.b32.xlu0 %v391, 64
    %v395 = vpop.permute.xlu0 %394
    %v397 = vmul.f32 %v391, %v395
    %399 = vrot.lane.b32.xlu0 %v397, 32
    %v400 = vpop.permute.xlu0 %399
    %v402 = vadd.f32 %v392, %v400
    %v403 = vtanh.pop %v402
    %405 = vrot.lane.b32.xlu0 %v403, 64
    %v406 = vpop.permute.xlu0 %405
    %v408 = vmul.f32 %v391, %v406
    %v409 = vpack.c.bf16 %v408, %v408
    %411 = vrot.lane.b32.xlu0 %v409, 32
    %v412 = vpop.permute.xlu0 %411
    %v414 = vsel %vm264, %v412, 0
    %416 = vmatprep.subr.bf16.mxu0 0
    %417 = vmatpush1.bf16.msra.mxu0 %v260
    %418 = vmatprep.subr.bf16.mxu0 0
    %419 = vmatpush1.bf16.msra.mxu0 %v261
    %420 = vmatprep.subr.bf16.mxu0 0
    %421 = vmatpush1.bf16.msra.mxu0 0
    %422 = vmatprep.subr.bf16.mxu0 0
    %423 = vmatpush1.bf16.msra.mxu0 0
    %424 = vmatprep.subr.bf16.mxu0 0
    %425 = vmatpush1.bf16.msra.mxu0 0
    %426 = vmatprep.subr.bf16.mxu0 0
    %427 = vmatpush1.bf16.msra.mxu0 0
    %428 = vmatprep.subr.bf16.mxu0 0
    %429 = vmatpush1.bf16.msra.mxu0 0
    %430 = vmatprep.subr.bf16.mxu0 0
    %431 = vmatpush1.bf16.msra.mxu0 0
    %432 = vmatprep.subr.bf16.mxu0 0
    %433 = vmatpush1.bf16.msra.mxu0 0
    %434 = vmatprep.subr.bf16.mxu0 0
    %435 = vmatpush1.bf16.msra.mxu0 0
    %436 = vmatprep.subr.bf16.mxu0 0
    %437 = vmatpush1.bf16.msra.mxu0 0
    %438 = vmatprep.subr.bf16.mxu0 0
    %439 = vmatpush1.bf16.msra.mxu0 0
    %440 = vmatprep.subr.bf16.mxu0 0
    %441 = vmatpush1.bf16.msra.mxu0 0
    %442 = vmatprep.subr.bf16.mxu0 0
    %443 = vmatpush1.bf16.msra.mxu0 0
    %444 = vmatprep.subr.bf16.mxu0 0
    %445 = vmatpush1.bf16.msra.mxu0 0
    %446 = vmatprep.subr.bf16.mxu0 0
    %447 = vmatpush1.bf16.msra.mxu0 0
    %448 = vmatprep.mubr.bf16.mxu0 0
    %449 = vmatmul.mubr.bf16.gmra.mrb[0].mxu0 %v414
    %v450 = vpop.f32.mrb[0].mxu0
    %v451 = vadd.f32 %v182, %v450
    %v452 = vpop.f32.mrb[0].mxu0
    %v453 = vpop.f32.mrb[0].mxu0
    %v454 = vpop.f32.mrb[0].mxu0
    %455 = vdwg.mxu0
    %v456 = vtanh.pop %v451
    %v457 = vxor.u32 %v451, 2147483648
    %v458 = vmul.f32 %v457, 1.442695
    %v459 = vpow.pop %v458
    %v460 = vadd.f32 %v459, 1.0
    %v461 = vrcp.pop %v460
    %v462 = vmul.f32 1.0, %v461
    %v463 = vsel %vm216, %v456, %v462
    %v464 = vmul.f32 %v463, %v402
    %466 = vrot.lane.b32.xlu0 %v463, 64
    %v467 = vpop.permute.xlu0 %466
    %v469 = vmul.f32 %v463, %v467
    %471 = vrot.lane.b32.xlu0 %v469, 32
    %v472 = vpop.permute.xlu0 %471
    %v474 = vadd.f32 %v464, %v472
    %v475 = vtanh.pop %v474
    %477 = vrot.lane.b32.xlu0 %v475, 64
    %v478 = vpop.permute.xlu0 %477
    %v480 = vmul.f32 %v463, %v478
    %v481 = vpack.c.bf16 %v480, %v480
    %483 = vrot.lane.b32.xlu0 %v481, 32
    %v484 = vpop.permute.xlu0 %483
    %v486 = vsel %vm264, %v484, 0
    %488 = vmatprep.subr.bf16.mxu0 0
    %489 = vmatpush1.bf16.msra.mxu0 %v260
    %490 = vmatprep.subr.bf16.mxu0 0
    %491 = vmatpush1.bf16.msra.mxu0 %v261
    %492 = vmatprep.subr.bf16.mxu0 0
    %493 = vmatpush1.bf16.msra.mxu0 0
    %494 = vmatprep.subr.bf16.mxu0 0
    %495 = vmatpush1.bf16.msra.mxu0 0
    %496 = vmatprep.subr.bf16.mxu0 0
    %497 = vmatpush1.bf16.msra.mxu0 0
    %498 = vmatprep.subr.bf16.mxu0 0
    %499 = vmatpush1.bf16.msra.mxu0 0
    %500 = vmatprep.subr.bf16.mxu0 0
    %501 = vmatpush1.bf16.msra.mxu0 0
    %502 = vmatprep.subr.bf16.mxu0 0
    %503 = vmatpush1.bf16.msra.mxu0 0
    %504 = vmatprep.subr.bf16.mxu0 0
    %505 = vmatpush1.bf16.msra.mxu0 0
    %506 = vmatprep.subr.bf16.mxu0 0
    %507 = vmatpush1.bf16.msra.mxu0 0
    %508 = vmatprep.subr.bf16.mxu0 0
    %509 = vmatpush1.bf16.msra.mxu0 0
    %510 = vmatprep.subr.bf16.mxu0 0
    %511 = vmatpush1.bf16.msra.mxu0 0
    %512 = vmatprep.subr.bf16.mxu0 0
    %513 = vmatpush1.bf16.msra.mxu0 0
    %514 = vmatprep.subr.bf16.mxu0 0
    %515 = vmatpush1.bf16.msra.mxu0 0
    %516 = vmatprep.subr.bf16.mxu0 0
    %517 = vmatpush1.bf16.msra.mxu0 0
    %518 = vmatprep.subr.bf16.mxu0 0
    %519 = vmatpush1.bf16.msra.mxu0 0
    %520 = vmatprep.mubr.bf16.mxu0 0
    %521 = vmatmul.mubr.bf16.gmra.mrb[0].mxu0 %v486
    %v522 = vpop.f32.mrb[0].mxu0
    %v523 = vadd.f32 %v190, %v522
    %v524 = vpop.f32.mrb[0].mxu0
    %v525 = vpop.f32.mrb[0].mxu0
    %v526 = vpop.f32.mrb[0].mxu0
    %527 = vdwg.mxu0
    %v528 = vtanh.pop %v523
    %v529 = vxor.u32 %v523, 2147483648
    %v530 = vmul.f32 %v529, 1.442695
    %v531 = vpow.pop %v530
    %v532 = vadd.f32 %v531, 1.0
    %v533 = vrcp.pop %v532
    %v534 = vmul.f32 1.0, %v533
    %v535 = vsel %vm216, %v528, %v534
    %v536 = vmul.f32 %v535, %v474
    %538 = vrot.lane.b32.xlu0 %v535, 64
    %v539 = vpop.permute.xlu0 %538
    %v541 = vmul.f32 %v535, %v539
    %543 = vrot.lane.b32.xlu0 %v541, 32
    %v544 = vpop.permute.xlu0 %543
    %v546 = vadd.f32 %v536, %v544
    %v547 = vtanh.pop %v546
    %549 = vrot.lane.b32.xlu0 %v547, 64
    %v550 = vpop.permute.xlu0 %549
    %v552 = vmul.f32 %v535, %v550
    %v553 = vpack.c.bf16 %v552, %v552
    %555 = vrot.lane.b32.xlu0 %v553, 32
    %v556 = vpop.permute.xlu0 %555
    %v558 = vsel %vm264, %v556, 0
    %560 = vmatprep.subr.bf16.mxu0 0
    %561 = vmatpush1.bf16.msra.mxu0 %v260
    %562 = vmatprep.subr.bf16.mxu0 0
    %563 = vmatpush1.bf16.msra.mxu0 %v261
    %564 = vmatprep.subr.bf16.mxu0 0
    %565 = vmatpush1.bf16.msra.mxu0 0
    %566 = vmatprep.subr.bf16.mxu0 0
    %567 = vmatpush1.bf16.msra.mxu0 0
    %568 = vmatprep.subr.bf16.mxu0 0
    %569 = vmatpush1.bf16.msra.mxu0 0
    %570 = vmatprep.subr.bf16.mxu0 0
    %571 = vmatpush1.bf16.msra.mxu0 0
    %572 = vmatprep.subr.bf16.mxu0 0
    %573 = vmatpush1.bf16.msra.mxu0 0
    %574 = vmatprep.subr.bf16.mxu0 0
    %575 = vmatpush1.bf16.msra.mxu0 0
    %576 = vmatprep.subr.bf16.mxu0 0
    %577 = vmatpush1.bf16.msra.mxu0 0
    %578 = vmatprep.subr.bf16.mxu0 0
    %579 = vmatpush1.bf16.msra.mxu0 0
    %580 = vmatprep.subr.bf16.mxu0 0
    %581 = vmatpush1.bf16.msra.mxu0 0
    %582 = vmatprep.subr.bf16.mxu0 0
    %583 = vmatpush1.bf16.msra.mxu0 0
    %584 = vmatprep.subr.bf16.mxu0 0
    %585 = vmatpush1.bf16.msra.mxu0 0
    %586 = vmatprep.subr.bf16.mxu0 0
    %587 = vmatpush1.bf16.msra.mxu0 0
    %588 = vmatprep.subr.bf16.mxu0 0
    %589 = vmatpush1.bf16.msra.mxu0 0
    %590 = vmatprep.subr.bf16.mxu0 0
    %591 = vmatpush1.bf16.msra.mxu0 0
    %592 = vmatprep.mubr.bf16.mxu0 0
    %593 = vmatmul.mubr.bf16.gmra.mrb[0].mxu0 %v558
    %v594 = vpop.f32.mrb[0].mxu0
    %v595 = vadd.f32 %v198, %v594
    %v596 = vpop.f32.mrb[0].mxu0
    %v597 = vpop.f32.mrb[0].mxu0
    %v598 = vpop.f32.mrb[0].mxu0
    %599 = vdwg.mxu0
    %v600 = vtanh.pop %v595
    %v601 = vxor.u32 %v595, 2147483648
    %v602 = vmul.f32 %v601, 1.442695
    %v603 = vpow.pop %v602
    %v604 = vadd.f32 %v603, 1.0
    %v605 = vrcp.pop %v604
    %v606 = vmul.f32 1.0, %v605
    %v607 = vsel %vm216, %v600, %v606
    %v608 = vmul.f32 %v607, %v546
    %610 = vrot.lane.b32.xlu0 %v607, 64
    %v611 = vpop.permute.xlu0 %610
    %v613 = vmul.f32 %v607, %v611
    %615 = vrot.lane.b32.xlu0 %v613, 32
    %v616 = vpop.permute.xlu0 %615
    %v618 = vadd.f32 %v608, %v616
    %v619 = vtanh.pop %v618
    %621 = vrot.lane.b32.xlu0 %v619, 64
    %v622 = vpop.permute.xlu0 %621
    %v624 = vmul.f32 %v607, %v622
    %v625 = vpack.c.bf16 %v624, %v624
    %627 = vrot.lane.b32.xlu0 %v625, 32
    %v628 = vpop.permute.xlu0 %627
    %v630 = vsel %vm264, %v628, 0
    %632 = vmatprep.subr.bf16.mxu0 0
    %633 = vmatpush1.bf16.msra.mxu0 %v260
    %634 = vmatprep.subr.bf16.mxu0 0
    %635 = vmatpush1.bf16.msra.mxu0 %v261
    %636 = vmatprep.subr.bf16.mxu0 0
    %637 = vmatpush1.bf16.msra.mxu0 0
    %638 = vmatprep.subr.bf16.mxu0 0
    %639 = vmatpush1.bf16.msra.mxu0 0
    %640 = vmatprep.subr.bf16.mxu0 0
    %641 = vmatpush1.bf16.msra.mxu0 0
    %642 = vmatprep.subr.bf16.mxu0 0
    %643 = vmatpush1.bf16.msra.mxu0 0
    %644 = vmatprep.subr.bf16.mxu0 0
    %645 = vmatpush1.bf16.msra.mxu0 0
    %646 = vmatprep.subr.bf16.mxu0 0
    %647 = vmatpush1.bf16.msra.mxu0 0
    %648 = vmatprep.subr.bf16.mxu0 0
    %649 = vmatpush1.bf16.msra.mxu0 0
    %650 = vmatprep.subr.bf16.mxu0 0
    %651 = vmatpush1.bf16.msra.mxu0 0
    %652 = vmatprep.subr.bf16.mxu0 0
    %653 = vmatpush1.bf16.msra.mxu0 0
    %654 = vmatprep.subr.bf16.mxu0 0
    %655 = vmatpush1.bf16.msra.mxu0 0
    %656 = vmatprep.subr.bf16.mxu0 0
    %657 = vmatpush1.bf16.msra.mxu0 0
    %658 = vmatprep.subr.bf16.mxu0 0
    %659 = vmatpush1.bf16.msra.mxu0 0
    %660 = vmatprep.subr.bf16.mxu0 0
    %661 = vmatpush1.bf16.msra.mxu0 0
    %662 = vmatprep.subr.bf16.mxu0 0
    %663 = vmatpush1.bf16.msra.mxu0 0
    %664 = vmatprep.mubr.bf16.mxu0 0
    %665 = vmatmul.mubr.bf16.gmra.mrb[0].mxu0 %v630
    %v666 = vpop.f32.mrb[0].mxu0
    %v667 = vadd.f32 %v197, %v666
    %v668 = vpop.f32.mrb[0].mxu0
    %v669 = vpop.f32.mrb[0].mxu0
    %v670 = vpop.f32.mrb[0].mxu0
    %671 = vdwg.mxu0
    %v672 = vtanh.pop %v667
    %v673 = vxor.u32 %v667, 2147483648
    %v674 = vmul.f32 %v673, 1.442695
    %v675 = vpow.pop %v674
    %v676 = vadd.f32 %v675, 1.0
    %v677 = vrcp.pop %v676
    %v678 = vmul.f32 1.0, %v677
    %v679 = vsel %vm216, %v672, %v678
    %v680 = vmul.f32 %v679, %v618
    %682 = vrot.lane.b32.xlu0 %v679, 64
    %v683 = vpop.permute.xlu0 %682
    %v685 = vmul.f32 %v679, %v683
    %687 = vrot.lane.b32.xlu0 %v685, 32
    %v688 = vpop.permute.xlu0 %687
    %v690 = vadd.f32 %v680, %v688
    %v691 = vtanh.pop %v690
    %693 = vrot.lane.b32.xlu0 %v691, 64
    %v694 = vpop.permute.xlu0 %693
    %v696 = vmul.f32 %v679, %v694
    %v697 = vpack.c.bf16 %v696, %v696
    %699 = vrot.lane.b32.xlu0 %v697, 32
    %v700 = vpop.permute.xlu0 %699
    %v702 = vsel %vm264, %v700, 0
    %704 = vmatprep.subr.bf16.mxu0 0
    %705 = vmatpush1.bf16.msra.mxu0 %v260
    %706 = vmatprep.subr.bf16.mxu0 0
    %707 = vmatpush1.bf16.msra.mxu0 %v261
    %708 = vmatprep.subr.bf16.mxu0 0
    %709 = vmatpush1.bf16.msra.mxu0 0
    %710 = vmatprep.subr.bf16.mxu0 0
    %711 = vmatpush1.bf16.msra.mxu0 0
    %712 = vmatprep.subr.bf16.mxu0 0
    %713 = vmatpush1.bf16.msra.mxu0 0
    %714 = vmatprep.subr.bf16.mxu0 0
    %715 = vmatpush1.bf16.msra.mxu0 0
    %716 = vmatprep.subr.bf16.mxu0 0
    %717 = vmatpush1.bf16.msra.mxu0 0
    %718 = vmatprep.subr.bf16.mxu0 0
    %719 = vmatpush1.bf16.msra.mxu0 0
    %720 = vmatprep.subr.bf16.mxu0 0
    %721 = vmatpush1.bf16.msra.mxu0 0
    %722 = vmatprep.subr.bf16.mxu0 0
    %723 = vmatpush1.bf16.msra.mxu0 0
    %724 = vmatprep.subr.bf16.mxu0 0
    %725 = vmatpush1.bf16.msra.mxu0 0
    %726 = vmatprep.subr.bf16.mxu0 0
    %727 = vmatpush1.bf16.msra.mxu0 0
    %728 = vmatprep.subr.bf16.mxu0 0
    %729 = vmatpush1.bf16.msra.mxu0 0
    %730 = vmatprep.subr.bf16.mxu0 0
    %731 = vmatpush1.bf16.msra.mxu0 0
    %732 = vmatprep.subr.bf16.mxu0 0
    %733 = vmatpush1.bf16.msra.mxu0 0
    %734 = vmatprep.subr.bf16.mxu0 0
    %735 = vmatpush1.bf16.msra.mxu0 0
    %736 = vmatprep.mubr.bf16.mxu0 0
    %737 = vmatmul.mubr.bf16.gmra.mrb[0].mxu0 %v702
    %v738 = vpop.f32.mrb[0].mxu0
    %v739 = vadd.f32 %v199, %v738
    %v740 = vpop.f32.mrb[0].mxu0
    %v741 = vpop.f32.mrb[0].mxu0
    %v742 = vpop.f32.mrb[0].mxu0
    %743 = vdwg.mxu0
    %v744 = vtanh.pop %v739
    %v745 = vxor.u32 %v739, 2147483648
    %v746 = vmul.f32 %v745, 1.442695
    %v747 = vpow.pop %v746
    %v748 = vadd.f32 %v747, 1.0
    %v749 = vrcp.pop %v748
    %v750 = vmul.f32 1.0, %v749
    %v751 = vsel %vm216, %v744, %v750
    %v752 = vmul.f32 %v751, %v690
    %754 = vrot.lane.b32.xlu0 %v751, 64
    %v755 = vpop.permute.xlu0 %754
    %v757 = vmul.f32 %v751, %v755
    %759 = vrot.lane.b32.xlu0 %v757, 32
    %v760 = vpop.permute.xlu0 %759
    %v762 = vadd.f32 %v752, %v760
    %v763 = vtanh.pop %v762
    %765 = vrot.lane.b32.xlu0 %v763, 64
    %v766 = vpop.permute.xlu0 %765
    %v768 = vmul.f32 %v751, %v766
    %v769 = vpack.c.bf16 %v768, %v768
    %771 = vrot.lane.b32.xlu0 %v769, 32
    %v772 = vpop.permute.xlu0 %771
    %v774 = vsel %vm264, %v772, 0
    %776 = vmatprep.subr.bf16.mxu0 0
    %777 = vmatpush1.bf16.msra.mxu0 %v260
    %778 = vmatprep.subr.bf16.mxu0 0
    %779 = vmatpush1.bf16.msra.mxu0 %v261
    %780 = vmatprep.subr.bf16.mxu0 0
    %781 = vmatpush1.bf16.msra.mxu0 0
    %782 = vmatprep.subr.bf16.mxu0 0
    %783 = vmatpush1.bf16.msra.mxu0 0
    %784 = vmatprep.subr.bf16.mxu0 0
    %785 = vmatpush1.bf16.msra.mxu0 0
    %786 = vmatprep.subr.bf16.mxu0 0
    %787 = vmatpush1.bf16.msra.mxu0 0
    %788 = vmatprep.subr.bf16.mxu0 0
    %789 = vmatpush1.bf16.msra.mxu0 0
    %790 = vmatprep.subr.bf16.mxu0 0
    %791 = vmatpush1.bf16.msra.mxu0 0
    %792 = vmatprep.subr.bf16.mxu0 0
    %793 = vmatpush1.bf16.msra.mxu0 0
    %794 = vmatprep.subr.bf16.mxu0 0
    %795 = vmatpush1.bf16.msra.mxu0 0
    %796 = vmatprep.subr.bf16.mxu0 0
    %797 = vmatpush1.bf16.msra.mxu0 0
    %798 = vmatprep.subr.bf16.mxu0 0
    %799 = vmatpush1.bf16.msra.mxu0 0
    %800 = vmatprep.subr.bf16.mxu0 0
    %801 = vmatpush1.bf16.msra.mxu0 0
    %802 = vmatprep.subr.bf16.mxu0 0
    %803 = vmatpush1.bf16.msra.mxu0 0
    %804 = vmatprep.subr.bf16.mxu0 0
    %805 = vmatpush1.bf16.msra.mxu0 0
    %806 = vmatprep.subr.bf16.mxu0 0
    %807 = vmatpush1.bf16.msra.mxu0 0
    %808 = vmatprep.mubr.bf16.mxu0 0
    %809 = vmatmul.mubr.bf16.gmra.mrb[0].mxu0 %v774
    %v810 = vpop.f32.mrb[0].mxu0
    %v811 = vadd.f32 %v173, %v810
    %v812 = vpop.f32.mrb[0].mxu0
    %v813 = vpop.f32.mrb[0].mxu0
    %v814 = vpop.f32.mrb[0].mxu0
    %815 = vdwg.mxu0
    %v816 = vtanh.pop %v811
    %v817 = vxor.u32 %v811, 2147483648
    %v818 = vmul.f32 %v817, 1.442695
    %v819 = vpow.pop %v818
    %v820 = vadd.f32 %v819, 1.0
    %v821 = vrcp.pop %v820
    %v822 = vmul.f32 1.0, %v821
    %v823 = vsel %vm216, %v816, %v822
    %v824 = vmul.f32 %v823, %v762
    %826 = vrot.lane.b32.xlu0 %v823, 64
    %v827 = vpop.permute.xlu0 %826
    %v829 = vmul.f32 %v823, %v827
    %831 = vrot.lane.b32.xlu0 %v829, 32
    %v832 = vpop.permute.xlu0 %831
    %v834 = vadd.f32 %v824, %v832
    %v835 = vtanh.pop %v834
    %837 = vrot.lane.b32.xlu0 %v835, 64
    %v838 = vpop.permute.xlu0 %837
    %v840 = vmul.f32 %v823, %v838
    %v841 = vmax.f32 %v840, 0.0
    %v842 = vld [vmem:[%s4] sm:$0x1]
    %v844 = vlaneseq
    %v845 = vshrl.u32 %v844, 7
    %v846 = vsub.s32 0, %v845
    %v847 = vrot.slane %v842, %v846
    %848 = vrot.lane.b32.xlu0 %v847, 112
    %v849 = vpop.permute.xlu0 %848
    %v851 = vmul.f32 %v841, %v849
    %853 = vrot.lane.b32.xlu0 %v851, 16
    %v854 = vpop.permute.xlu0 %853
    %vm856 = vcmask 123904
    %v857 = vsel %vm856, %v854, 0.0
    %858 = vadd.xlane.f32.xlu0 %v857
    %v859 = vpop.xlane.xlu0 %858
    %v860 = vld [vmem:[#allocation2] sm:$0x1]
    %v862 = vlaneseq
    %v863 = vshrl.u32 %v862, 7
    %v864 = vsub.s32 0, %v863
    %v865 = vrot.slane %v860, %v864
    %v867 = vadd.f32 %v859, %v865
    %vm868 = vcmask 1024
    %869 = vst.msk [vmem:[%s6] sm:$0x3] %vm868, %v867
    // Predicated region
    $region38: #{tpu_custom_call.1} parent=1 // pred_check
      _
    $region39: #{tpu_custom_call.1} parent=1 // pred_check_branch
      %871 = sbr.rel (0) target = $region41
    $region40: #{tpu_custom_call.1} parent=1 // pred_region
      _
    $region41: #{tpu_custom_call.1} parent=1 // pred_fallthru
      _
    // Predicated region
    $region42: #{tpu_custom_call.1} parent=1 // pred_check
      _
    $region43: #{tpu_custom_call.1} parent=1 // pred_check_branch
      %873 = sbr.rel (0) target = $region45
    $region44: #{tpu_custom_call.1} parent=1 // pred_region
      _
    $region45: #{tpu_custom_call.1} parent=1 // pred_fallthru
      _
    %874 = vsyncpa [#allocation4], 1
    %875 = vsyncpa [#allocation6], 1

</llo_original>
